<compile_context>
chip_gen: v5e
topology: v5e:2x2
jax: 0.10.0
libtpu: 0.0.40
codegen_flags: <defaults>
</compile_context>

<pallas_src>
import functools

import jax
import jax.numpy as jnp
from jax.experimental import pallas as pl
from jax.experimental.pallas import tpu as pltpu

_LANE = 128      # vreg lane width / MXU column granularity
_SUBLANE = 8     # vreg sublane granularity


def _round_up(x, m):
    return (x + m - 1) // m * m


def _cdiv(a, b):
    return -(-a // b)


def _residual_mlp_kernel(zt_ref, w1_ref, b1_ref, w2_ref, b2_ref, w3_ref, b3_ref,
                         o_ref):
    # Whole hot path (3 matmuls + 2 ReLUs + residual add) in one kernel body.
    cdt = zt_ref.dtype                    # MXU input dtype (f32 or bf16)

    h = jnp.dot(zt_ref[...], w1_ref[...], preferred_element_type=jnp.float32)
    h = jnp.maximum(h + b1_ref[...], 0.0).astype(cdt)

    h = jnp.dot(h, w2_ref[...], preferred_element_type=jnp.float32)
    h = jnp.maximum(h + b2_ref[...], 0.0).astype(cdt)

    res = jnp.dot(h, w3_ref[...], preferred_element_type=jnp.float32)
    res = res + b3_ref[...]

    # Re-read the input tile from VMEM for the residual (cheap) instead of keeping
    # it live in vregs across three matmuls.
    o_ref[...] = (zt_ref[...].astype(jnp.float32) + res).astype(o_ref.dtype)


def _const_spec(shape):
    """BlockSpec for a block that is identical at every grid step (weights/biases)."""
    idx = lambda i: (0, 0)
    try:
        return pl.BlockSpec(shape, idx, pipeline_mode=pl.Buffered(1))
    except TypeError:  # older Pallas without pipeline_mode kwarg
        return pl.BlockSpec(shape, idx)


def _pad2(x, rows, cols):
    pr, pc = rows - x.shape[0], cols - x.shape[1]
    if pr == 0 and pc == 0:
        return x
    return jnp.pad(x, ((0, pr), (0, pc)))


@functools.partial(jax.jit, static_argnames=("block_b", "compute_dtype"))
def residual_mlp(zt, w1, b1, w2, b2, w3, b3, *, block_b=512, compute_dtype=None):
    """zt: (B, D_in); wN: (in, out) [PyTorch weight transposed]; bN: (out,) or (1, out).

    compute_dtype: dtype fed to the MXU (e.g. jnp.bfloat16 on v5e/v6e for ~3x MXU
    throughput).  Accumulation and bias/ReLU/residual math is always f32; output
    keeps zt's original dtype.
    """
    B, D_in = zt.shape
    H = w1.shape[1]
    D_out = w3.shape[1]
    assert D_out == D_in, "residual add requires output_dim == input_dim"

    out_dtype = zt.dtype
    cdt = jnp.dtype(compute_dtype) if compute_dtype is not None else jnp.dtype(zt.dtype)

    # One compute dtype for all matmul operands; biases kept in f32 (used in f32 math).
    zt_c = zt if zt.dtype == cdt else zt.astype(cdt)
    w1, w2, w3 = (w if w.dtype == cdt else w.astype(cdt) for w in (w1, w2, w3))
    b1, b2, b3 = (b.reshape(1, -1).astype(jnp.float32) for b in (b1, b2, b3))

    # --- feature dims padded to lane multiples (unmasked loads/stores, full MXU) ---
    D_in_p = _round_up(D_in, _LANE)
    H_p = _round_up(H, _LANE)
    D_out_p = _round_up(D_out, _LANE)

    # --- batch tiling: minimize padding waste; >=2 steps when batch is large so the
    # "parallel" grid axis can feed both TensorCores on v7x (harmless elsewhere) ---
    n_steps = max(1, _cdiv(B, block_b))
    if n_steps < 2 and B >= 512:
        n_steps = 2
    bb = max(_SUBLANE, _round_up(_cdiv(B, n_steps), _SUBLANE))
    B_p = n_steps * bb

    zt_p = _pad2(zt_c, B_p, D_in_p)
    w1_p = _pad2(w1, D_in_p, H_p)
    b1_p = _pad2(b1, 1, H_p)
    w2_p = _pad2(w2, H_p, H_p)
    b2_p = _pad2(b2, 1, H_p)
    w3_p = _pad2(w3, H_p, D_out_p)
    b3_p = _pad2(b3, 1, D_out_p)

    # --- cost estimate & VMEM budget ---
    act_bytes = cdt.itemsize
    out_bytes = jnp.dtype(out_dtype).itemsize
    w_bytes = (D_in_p * H_p + H_p * H_p + H_p * D_out_p) * act_bytes
    bias_bytes = (2 * H_p + D_out_p) * 4
    flops = 2 * B_p * (D_in_p * H_p + H_p * H_p + H_p * D_out_p)
    bytes_accessed = (B_p * D_in_p * act_bytes + B_p * D_out_p * out_bytes
                      + w_bytes + bias_bytes)
    cost = pl.CostEstimate(flops=flops, transcendentals=0,
                           bytes_accessed=bytes_accessed)

    # Activations/output double-buffered by the pipeline; weights/biases single-buffered.
    tiles_bytes = 2 * bb * D_in_p * act_bytes + 2 * bb * D_out_p * out_bytes
    inter_bytes = 2 * bb * H_p * 4                           # f32 h1 / h2 live in body
    vmem_est = tiles_bytes + w_bytes + bias_bytes + inter_bytes + (2 << 20)

    try:
        phys_vmem = int(pltpu.get_tpu_info().vmem_capacity_bytes)
    except Exception:
        phys_vmem = 128 * 1024 * 1024
    # Leave headroom for Mosaic internal scratch; never request more than ~100 MiB.
    cap = min(int(phys_vmem * 0.8), 100 * 1024 * 1024)
    vmem_limit = int(min(max(vmem_est, 16 * 1024 * 1024), cap))

    if w_bytes + bias_bytes > cap // 2:
        # TODO(synk): stream weight panels with a hidden-dim grid axis + VMEM accumulator
        # instead of requiring full weight residency.
        raise ValueError(
            f"ResidualMLP weights ({(w_bytes + bias_bytes) / 2**20:.1f} MiB) do not fit "
            f"the VMEM budget ({cap / 2**20:.1f} MiB); hidden_dim too large for the "
            "fully-resident schedule.")

    zt_spec = pl.BlockSpec((bb, D_in_p), lambda i: (i, 0))
    out_spec = pl.BlockSpec((bb, D_out_p), lambda i: (i, 0))
    w1_spec = _const_spec((D_in_p, H_p))
    b1_spec = _const_spec((1, H_p))
    w2_spec = _const_spec((H_p, H_p))
    b2_spec = _const_spec((1, H_p))
    w3_spec = _const_spec((H_p, D_out_p))
    b3_spec = _const_spec((1, D_out_p))

    out_p = pl.pallas_call(
        _residual_mlp_kernel,
        out_shape=jax.ShapeDtypeStruct((B_p, D_out_p), out_dtype),
        grid_spec=pltpu.PrefetchScalarGridSpec(
            num_scalar_prefetch=0,
            grid=(n_steps,),
            in_specs=[zt_spec, w1_spec, b1_spec, w2_spec, b2_spec, w3_spec,
                      b3_spec],
            out_specs=out_spec,
        ),
        compiler_params=pltpu.CompilerParams(
            dimension_semantics=("parallel",),
            vmem_limit_bytes=vmem_limit),
        cost_estimate=cost,
    )(zt_p, w1_p, b1_p, w2_p, b2_p, w3_p, b3_p)

    if B_p == B and D_out_p == D_out:
        return out_p
    return out_p[:B, :D_out]


def _init_linear(key, in_features, out_features, dtype=jnp.float32):
    # Deterministic init matching nn.Linear's U(-1/sqrt(in), 1/sqrt(in)) scheme.
    kw, kb = jax.random.split(key)
    bound = 1.0 / (in_features ** 0.5)
    # Stored as (in, out) == PyTorch weight transposed.
    w = jax.random.uniform(kw, (in_features, out_features), dtype,
                           minval=-bound, maxval=bound)
    b = jax.random.uniform(kb, (out_features,), dtype,
                           minval=-bound, maxval=bound)
    return w, b


def _reference(zt, w1, b1, w2, b2, w3, b3):
    x = jax.nn.relu(zt @ w1 + b1)
    x = jax.nn.relu(x @ w2 + b2)
    return zt + (x @ w3 + b3)


if __name__ == "__main__":
    key = jax.random.PRNGKey(0)

    # ---- case 1: the module's toy shapes (B=8, D=32, H=64), grid collapses to (1,) ----
    k_in, k1, k2, k3, k_rest = jax.random.split(key, 5)
    B, input_dim, hidden_dim, output_dim = 8, 32, 64, 32

    zt = jax.random.normal(k_in, (B, input_dim), jnp.float32)
    w1, b1 = _init_linear(k1, input_dim, hidden_dim)
    w2, b2 = _init_linear(k2, hidden_dim, hidden_dim)
    w3, b3 = _init_linear(k3, hidden_dim, output_dim)

    out = jax.block_until_ready(residual_mlp(zt, w1, b1, w2, b2, w3, b3))
    ref = _reference(zt, w1, b1, w2, b2, w3, b3)
    assert out.shape == (B, output_dim)
    assert jnp.allclose(out, ref, atol=1e-5, rtol=1e-5), "f32 mismatch vs reference"

    # bf16 MXU path (recommended on v5e/v6e): bf16 matmul inputs, f32 accumulation.
    out_bf16 = jax.block_until_ready(residual_mlp(
        zt, w1, b1, w2, b2, w3, b3, compute_dtype=jnp.bfloat16))
    assert out_bf16.dtype == zt.dtype
    assert jnp.allclose(out_bf16, ref, atol=5e-2, rtol=5e-2), \
        "bf16 mismatch vs reference"

    # ---- case 2: ragged batch + non-128 dims exercise the padded, multi-tile path ----
    k_in2, k4, k5, k6 = jax.random.split(k_rest, 4)
    B2, d2, h2 = 300, 48, 96
    zt2 = jax.random.normal(k_in2, (B2, d2), jnp.float32)
    w1b, b1b = _init_linear(k4, d2, h2)
    w2b, b2b = _init_linear(k5, h2, h2)
    w3b, b3b = _init_linear(k6, h2, d2)

    out2 = jax.block_until_ready(
        residual_mlp(zt2, w1b, b1b, w2b, b2b, w3b, b3b, block_b=128))
    ref2 = _reference(zt2, w1b, b1b, w2b, b2b, w3b, b3b)
    assert out2.shape == (B2, d2)
    assert jnp.allclose(out2, ref2, atol=1e-5, rtol=1e-5), "padded-path mismatch"

    print("KERNEL_OK")
</pallas_src>

<mosaic_0001>
module attributes {stable_mosaic.version = 11 : i64} {
  func.func @_residual_mlp_kernel(%arg0: i32, %arg1: memref<8x128xf32, #tpu.memory_space<vmem>>, %arg2: memref<128x128xf32, #tpu.memory_space<vmem>>, %arg3: memref<1x128xf32, #tpu.memory_space<vmem>>, %arg4: memref<128x128xf32, #tpu.memory_space<vmem>>, %arg5: memref<1x128xf32, #tpu.memory_space<vmem>>, %arg6: memref<128x128xf32, #tpu.memory_space<vmem>>, %arg7: memref<1x128xf32, #tpu.memory_space<vmem>>, %arg8: memref<8x128xf32, #tpu.memory_space<vmem>>) attributes {dimension_semantics = [#tpu.dimension_semantics<parallel>], iteration_bounds = array<i64: 1>, scalar_prefetch = 0 : i64, scratch_operands = 0 : i64, tpu.core_type = #tpu.core_type<tc>, window_params = [{transform_indices = @transform_0, window_bounds = array<i64: 8, 128>}, {pipeline_mode = #tpu.pipeline_mode<synchronous>, transform_indices = @transform_1, window_bounds = array<i64: 128, 128>}, {pipeline_mode = #tpu.pipeline_mode<synchronous>, transform_indices = @transform_2, window_bounds = array<i64: 1, 128>}, {pipeline_mode = #tpu.pipeline_mode<synchronous>, transform_indices = @transform_3, window_bounds = array<i64: 128, 128>}, {pipeline_mode = #tpu.pipeline_mode<synchronous>, transform_indices = @transform_4, window_bounds = array<i64: 1, 128>}, {pipeline_mode = #tpu.pipeline_mode<synchronous>, transform_indices = @transform_5, window_bounds = array<i64: 128, 128>}, {pipeline_mode = #tpu.pipeline_mode<synchronous>, transform_indices = @transform_6, window_bounds = array<i64: 1, 128>}, {transform_indices = @transform_7, window_bounds = array<i64: 8, 128>}]} {
    %c0 = arith.constant 0 : index
    %c0_0 = arith.constant 0 : index
    %0 = vector.load %arg1[%c0, %c0_0] : memref<8x128xf32, #tpu.memory_space<vmem>>, vector<8x128xf32>
    %c0_1 = arith.constant 0 : index
    %c0_2 = arith.constant 0 : index
    %1 = vector.load %arg2[%c0_1, %c0_2] : memref<128x128xf32, #tpu.memory_space<vmem>>, vector<128x128xf32>
    %cst = arith.constant dense<0.000000e+00> : vector<8x128xf32>
    %2 = tpu.matmul %0, %1, %cst {dimension_numbers = #tpu.dot_dimension_numbers<[1], [0], [0], [1], [0, 0, 1, 1], [], []>} : vector<8x128xf32>, vector<128x128xf32>, vector<8x128xf32> -> vector<8x128xf32>
    %c0_3 = arith.constant 0 : index
    %c0_4 = arith.constant 0 : index
    %3 = vector.load %arg3[%c0_3, %c0_4] : memref<1x128xf32, #tpu.memory_space<vmem>>, vector<1x128xf32>
    %4 = vector.broadcast %3 : vector<1x128xf32> to vector<8x128xf32>
    %5 = arith.addf %2, %4 : vector<8x128xf32>
    %cst_5 = arith.constant 0.000000e+00 : f32
    %6 = vector.broadcast %cst_5 : f32 to vector<8x128xf32>
    %7 = arith.maximumf %5, %6 : vector<8x128xf32>
    %c0_6 = arith.constant 0 : index
    %c0_7 = arith.constant 0 : index
    %8 = vector.load %arg4[%c0_6, %c0_7] : memref<128x128xf32, #tpu.memory_space<vmem>>, vector<128x128xf32>
    %cst_8 = arith.constant dense<0.000000e+00> : vector<8x128xf32>
    %9 = tpu.matmul %7, %8, %cst_8 {dimension_numbers = #tpu.dot_dimension_numbers<[1], [0], [0], [1], [0, 0, 1, 1], [], []>} : vector<8x128xf32>, vector<128x128xf32>, vector<8x128xf32> -> vector<8x128xf32>
    %c0_9 = arith.constant 0 : index
    %c0_10 = arith.constant 0 : index
    %10 = vector.load %arg5[%c0_9, %c0_10] : memref<1x128xf32, #tpu.memory_space<vmem>>, vector<1x128xf32>
    %11 = vector.broadcast %10 : vector<1x128xf32> to vector<8x128xf32>
    %12 = arith.addf %9, %11 : vector<8x128xf32>
    %cst_11 = arith.constant 0.000000e+00 : f32
    %13 = vector.broadcast %cst_11 : f32 to vector<8x128xf32>
    %14 = arith.maximumf %12, %13 : vector<8x128xf32>
    %c0_12 = arith.constant 0 : index
    %c0_13 = arith.constant 0 : index
    %15 = vector.load %arg6[%c0_12, %c0_13] : memref<128x128xf32, #tpu.memory_space<vmem>>, vector<128x128xf32>
    %cst_14 = arith.constant dense<0.000000e+00> : vector<8x128xf32>
    %16 = tpu.matmul %14, %15, %cst_14 {dimension_numbers = #tpu.dot_dimension_numbers<[1], [0], [0], [1], [0, 0, 1, 1], [], []>} : vector<8x128xf32>, vector<128x128xf32>, vector<8x128xf32> -> vector<8x128xf32>
    %c0_15 = arith.constant 0 : index
    %c0_16 = arith.constant 0 : index
    %17 = vector.load %arg7[%c0_15, %c0_16] : memref<1x128xf32, #tpu.memory_space<vmem>>, vector<1x128xf32>
    %18 = vector.broadcast %17 : vector<1x128xf32> to vector<8x128xf32>
    %19 = arith.addf %16, %18 : vector<8x128xf32>
    %c0_17 = arith.constant 0 : index
    %c0_18 = arith.constant 0 : index
    %20 = vector.load %arg1[%c0_17, %c0_18] : memref<8x128xf32, #tpu.memory_space<vmem>>, vector<8x128xf32>
    %21 = arith.addf %20, %19 : vector<8x128xf32>
    %c0_19 = arith.constant 0 : index
    %c0_20 = arith.constant 0 : index
    %22 = vector.load %arg8[%c0_19, %c0_20] : memref<8x128xf32, #tpu.memory_space<vmem>>, vector<8x128xf32>
    tpu.vector_store %arg8[%c0_19, %c0_20], %21 {strides = array<i32>} : memref<8x128xf32, #tpu.memory_space<vmem>>, vector<8x128xf32>,
    return
  }
  func.func @transform_0(%arg0: i32) -> (i32, i32) {
    %c0_i32 = arith.constant 0 : i32
    %c0_i32_0 = arith.constant 0 : i32
    return %arg0, %c0_i32 : i32, i32
  }
  func.func @transform_1(%arg0: i32) -> (i32, i32) {
    %c0_i32 = arith.constant 0 : i32
    %c0_i32_0 = arith.constant 0 : i32
    %c0_i32_1 = arith.constant 0 : i32
    return %c0_i32, %c0_i32_0 : i32, i32
  }
  func.func @transform_2(%arg0: i32) -> (i32, i32) {
    %c0_i32 = arith.constant 0 : i32
    %c0_i32_0 = arith.constant 0 : i32
    %c0_i32_1 = arith.constant 0 : i32
    return %c0_i32, %c0_i32_0 : i32, i32
  }
  func.func @transform_3(%arg0: i32) -> (i32, i32) {
    %c0_i32 = arith.constant 0 : i32
    %c0_i32_0 = arith.constant 0 : i32
    %c0_i32_1 = arith.constant 0 : i32
    return %c0_i32, %c0_i32_0 : i32, i32
  }
  func.func @transform_4(%arg0: i32) -> (i32, i32) {
    %c0_i32 = arith.constant 0 : i32
    %c0_i32_0 = arith.constant 0 : i32
    %c0_i32_1 = arith.constant 0 : i32
    return %c0_i32, %c0_i32_0 : i32, i32
  }
  func.func @transform_5(%arg0: i32) -> (i32, i32) {
    %c0_i32 = arith.constant 0 : i32
    %c0_i32_0 = arith.constant 0 : i32
    %c0_i32_1 = arith.constant 0 : i32
    return %c0_i32, %c0_i32_0 : i32, i32
  }
  func.func @transform_6(%arg0: i32) -> (i32, i32) {
    %c0_i32 = arith.constant 0 : i32
    %c0_i32_0 = arith.constant 0 : i32
    %c0_i32_1 = arith.constant 0 : i32
    return %c0_i32, %c0_i32_0 : i32, i32
  }
  func.func @transform_7(%arg0: i32) -> (i32, i32) {
    %c0_i32 = arith.constant 0 : i32
    %c0_i32_0 = arith.constant 0 : i32
    return %arg0, %c0_i32 : i32, i32
  }
}

</mosaic_0001>

<llo_original>
// kernel: residual_mlp.1
$region0: #{residual_mlp.1}
  #allocation0 [shape = 'u32[]', space=smem, size = 0x4, offset = 0x4, fixed_abs, tag = 'smem constant byte address 0x4 - core index']
  #allocation1 [shape = 'u32[72,128]{1,0:T(1,128)}', space=vmem, size = 0x9000, scoped, tag = 'internal scratch']
  %s0 = inlined_call_operand.vmem [shape: f32[8,128], index: 0, kind: input, shape index: {}]
  %s1 = inlined_call_operand.vmem [shape: f32[128,128], index: 1, kind: input, shape index: {}]
  %s2 = inlined_call_operand.vmem [shape: f32[1,128], index: 2, kind: input, shape index: {}]
  %s3 = inlined_call_operand.vmem [shape: f32[128,128], index: 3, kind: input, shape index: {}]
  %s4 = inlined_call_operand.vmem [shape: f32[1,128], index: 4, kind: input, shape index: {}]
  %s5 = inlined_call_operand.vmem [shape: f32[128,128], index: 5, kind: input, shape index: {}]
  %s6 = inlined_call_operand.vmem [shape: f32[1,128], index: 6, kind: input, shape index: {}]
  %s7 = inlined_call_operand.hbm [shape: f32[8,128], index: 7, kind: output, shape index: {}]
  %s8 = sld [smem:[#allocation0]]
  $region38: #{residual_mlp.1} parent=0
    _
  %s10 = ssub.s32 1, %s8
  %s11 = scalar_select 0, %s10, %s8
  $region1: #{residual_mlp.1} parent=0
    #allocation2 [shape = 'u8[4096]{0}', space=vmem, size = 0x1000, scoped, tag = 'output window, operand 0, single buffered']
    #allocation3 [shape = 's32[1]{0}', space=sflag, size = 0x4, scoped, tag = 'scoped memory for residual_mlp.1']
    %12 = vsyncpa [#allocation3], 0
    // Predicated region
    $region2: #{residual_mlp.1} parent=1 // pred_check
      _
    $region3: #{residual_mlp.1} parent=1 // pred_check_branch
      %14 = sbr.rel (0) target = $region5
    $region4: #{residual_mlp.1} parent=1 // pred_region
      _
    $region5: #{residual_mlp.1} parent=1 // pred_fallthru
      _
    // Predicated region
    $region6: #{residual_mlp.1} parent=1 // pred_check
      _
    $region7: #{residual_mlp.1} parent=1 // pred_check_branch
      %16 = sbr.rel (0) target = $region9
    $region8: #{residual_mlp.1} parent=1 // pred_region
      _
    $region9: #{residual_mlp.1} parent=1 // pred_fallthru
      _
    // Predicated region
    $region10: #{residual_mlp.1} parent=1 // pred_check
      _
    $region11: #{residual_mlp.1} parent=1 // pred_check_branch
      %18 = sbr.rel (0) target = $region13
    $region12: #{residual_mlp.1} parent=1 // pred_region
      _
    $region13: #{residual_mlp.1} parent=1 // pred_fallthru
      _
    // Predicated region
    $region14: #{residual_mlp.1} parent=1 // pred_check
      _
    $region15: #{residual_mlp.1} parent=1 // pred_check_branch
      %20 = sbr.rel (0) target = $region17
    $region16: #{residual_mlp.1} parent=1 // pred_region
      _
    $region17: #{residual_mlp.1} parent=1 // pred_fallthru
      _
    // Predicated region
    $region18: #{residual_mlp.1} parent=1 // pred_check
      _
    $region19: #{residual_mlp.1} parent=1 // pred_check_branch
      %22 = sbr.rel (0) target = $region21
    $region20: #{residual_mlp.1} parent=1 // pred_region
      _
    $region21: #{residual_mlp.1} parent=1 // pred_fallthru
      _
    // Predicated region
    $region22: #{residual_mlp.1} parent=1 // pred_check
      _
    $region23: #{residual_mlp.1} parent=1 // pred_check_branch
      %24 = sbr.rel (0) target = $region25
    $region24: #{residual_mlp.1} parent=1 // pred_region
      _
    $region25: #{residual_mlp.1} parent=1 // pred_fallthru
      _
    // Predicated region
    $region26: #{residual_mlp.1} parent=1 // pred_check
      _
    $region27: #{residual_mlp.1} parent=1 // pred_check_branch
      %26 = sbr.rel (0) target = $region29
    $region28: #{residual_mlp.1} parent=1 // pred_region
      _
    $region29: #{residual_mlp.1} parent=1 // pred_fallthru
      _
    %v27 = vld [vmem:[%s0] sm:$0xff]
    %v28 = vld [vmem:[%s1] sm:$0xff]
    %v29 = vld [vmem:[%s1 + $0x8] sm:$0xff]
    %v30 = vld [vmem:[%s1 + $0x10] sm:$0xff]
    %v31 = vld [vmem:[%s1 + $0x18] sm:$0xff]
    %v32 = vld [vmem:[%s1 + $0x20] sm:$0xff]
    %v33 = vld [vmem:[%s1 + $0x28] sm:$0xff]
    %v34 = vld [vmem:[%s1 + $0x30] sm:$0xff]
    %v35 = vld [vmem:[%s1 + $0x38] sm:$0xff]
    %v36 = vld [vmem:[%s1 + $0x40] sm:$0xff]
    %v37 = vld [vmem:[%s1 + $0x48] sm:$0xff]
    %v38 = vld [vmem:[%s1 + $0x50] sm:$0xff]
    %v39 = vld [vmem:[%s1 + $0x58] sm:$0xff]
    %v40 = vld [vmem:[%s1 + $0x60] sm:$0xff]
    %v41 = vld [vmem:[%s1 + $0x68] sm:$0xff]
    %v42 = vld [vmem:[%s1 + $0x70] sm:$0xff]
    %v43 = vld [vmem:[%s1 + $0x78] sm:$0xff]
    %v44 = vld [vmem:[%s2] sm:$0x1]
    %v46 = vperm.slane %v44, 0
    %48 = vmatpush.msra.mxu0 %v43
    %49 = vmatpush.msra.mxu0 %v42
    %50 = vmatpush.msra.mxu0 %v41
    %51 = vmatpush.msra.mxu0 %v40
    %52 = vmatpush.msra.mxu0 %v39
    %53 = vmatpush.msra.mxu0 %v38
    %54 = vmatpush.msra.mxu0 %v37
    %55 = vmatpush.msra.mxu0 %v36
    %56 = vmatpush.msra.mxu0 %v35
    %57 = vmatpush.msra.mxu0 %v34
    %58 = vmatpush.msra.mxu0 %v33
    %59 = vmatpush.msra.mxu0 %v32
    %60 = vmatpush.msra.mxu0 %v31
    %61 = vmatpush.msra.mxu0 %v30
    %62 = vmatpush.msra.mxu0 %v29
    %63 = vmatpush.msra.mxu0 %v28
    %64 = vmatmul.f32.gmra.mxu0 %v27
    %v65 = vpop.f32.mrf.mxu0
    %v66 = vadd.f32 %v46, %v65
    %67 = vdwg.mxu0
    %v68 = vmax.f32 %v66, 0.0
    %v69 = vld [vmem:[%s3] sm:$0xff]
    %v70 = vld [vmem:[%s3 + $0x8] sm:$0xff]
    %v71 = vld [vmem:[%s3 + $0x10] sm:$0xff]
    %v72 = vld [vmem:[%s3 + $0x18] sm:$0xff]
    %v73 = vld [vmem:[%s3 + $0x20] sm:$0xff]
    %v74 = vld [vmem:[%s3 + $0x28] sm:$0xff]
    %v75 = vld [vmem:[%s3 + $0x30] sm:$0xff]
    %v76 = vld [vmem:[%s3 + $0x38] sm:$0xff]
    %v77 = vld [vmem:[%s3 + $0x40] sm:$0xff]
    %v78 = vld [vmem:[%s3 + $0x48] sm:$0xff]
    %v79 = vld [vmem:[%s3 + $0x50] sm:$0xff]
    %v80 = vld [vmem:[%s3 + $0x58] sm:$0xff]
    %v81 = vld [vmem:[%s3 + $0x60] sm:$0xff]
    %v82 = vld [vmem:[%s3 + $0x68] sm:$0xff]
    %v83 = vld [vmem:[%s3 + $0x70] sm:$0xff]
    %v84 = vld [vmem:[%s3 + $0x78] sm:$0xff]
    %v85 = vld [vmem:[%s4] sm:$0x1]
    %v87 = vperm.slane %v85, 0
    %89 = vmatpush.msra.mxu0 %v84
    %90 = vmatpush.msra.mxu0 %v83
    %91 = vmatpush.msra.mxu0 %v82
    %92 = vmatpush.msra.mxu0 %v81
    %93 = vmatpush.msra.mxu0 %v80
    %94 = vmatpush.msra.mxu0 %v79
    %95 = vmatpush.msra.mxu0 %v78
    %96 = vmatpush.msra.mxu0 %v77
    %97 = vmatpush.msra.mxu0 %v76
    %98 = vmatpush.msra.mxu0 %v75
    %99 = vmatpush.msra.mxu0 %v74
    %100 = vmatpush.msra.mxu0 %v73
    %101 = vmatpush.msra.mxu0 %v72
    %102 = vmatpush.msra.mxu0 %v71
    %103 = vmatpush.msra.mxu0 %v70
    %104 = vmatpush.msra.mxu0 %v69
    %105 = vmatmul.f32.gmra.mxu0 %v68
    %v106 = vpop.f32.mrf.mxu0
    %v107 = vadd.f32 %v87, %v106
    %108 = vdwg.mxu0
    %v109 = vmax.f32 %v107, 0.0
    %v110 = vld [vmem:[%s5] sm:$0xff]
    %v111 = vld [vmem:[%s5 + $0x8] sm:$0xff]
    %v112 = vld [vmem:[%s5 + $0x10] sm:$0xff]
    %v113 = vld [vmem:[%s5 + $0x18] sm:$0xff]
    %v114 = vld [vmem:[%s5 + $0x20] sm:$0xff]
    %v115 = vld [vmem:[%s5 + $0x28] sm:$0xff]
    %v116 = vld [vmem:[%s5 + $0x30] sm:$0xff]
    %v117 = vld [vmem:[%s5 + $0x38] sm:$0xff]
    %v118 = vld [vmem:[%s5 + $0x40] sm:$0xff]
    %v119 = vld [vmem:[%s5 + $0x48] sm:$0xff]
    %v120 = vld [vmem:[%s5 + $0x50] sm:$0xff]
    %v121 = vld [vmem:[%s5 + $0x58] sm:$0xff]
    %v122 = vld [vmem:[%s5 + $0x60] sm:$0xff]
    %v123 = vld [vmem:[%s5 + $0x68] sm:$0xff]
    %v124 = vld [vmem:[%s5 + $0x70] sm:$0xff]
    %v125 = vld [vmem:[%s5 + $0x78] sm:$0xff]
    %v126 = vld [vmem:[%s6] sm:$0x1]
    %v128 = vperm.slane %v126, 0
    %130 = vmatpush.msra.mxu0 %v125
    %131 = vmatpush.msra.mxu0 %v124
    %132 = vmatpush.msra.mxu0 %v123
    %133 = vmatpush.msra.mxu0 %v122
    %134 = vmatpush.msra.mxu0 %v121
    %135 = vmatpush.msra.mxu0 %v120
    %136 = vmatpush.msra.mxu0 %v119
    %137 = vmatpush.msra.mxu0 %v118
    %138 = vmatpush.msra.mxu0 %v117
    %139 = vmatpush.msra.mxu0 %v116
    %140 = vmatpush.msra.mxu0 %v115
    %141 = vmatpush.msra.mxu0 %v114
    %142 = vmatpush.msra.mxu0 %v113
    %143 = vmatpush.msra.mxu0 %v112
    %144 = vmatpush.msra.mxu0 %v111
    %145 = vmatpush.msra.mxu0 %v110
    %146 = vmatmul.f32.gmra.mxu0 %v109
    %v147 = vpop.f32.mrf.mxu0
    %v148 = vadd.f32 %v128, %v147
    %149 = vdwg.mxu0
    %v150 = vadd.f32 %v27, %v148
    %151 = vst [vmem:[#allocation2] sm:$0xff] %v150
    // Predicated region
    $region30: #{residual_mlp.1} parent=1 // pred_check
      _
    $region31: #{residual_mlp.1} parent=1 // pred_check_branch
      %153 = sbr.rel (0) target = $region33
    $region32: #{residual_mlp.1} parent=1 // pred_region
      %155 = vsyncadd [#allocation3], 0
      %s157 = sshll.u32 [#allocation2], 4
      %s158 = int_to_ptr.vmem [resolvable:$true] %s157
      %s159 = sshll.u32 %s7, 4
      %s160 = int_to_ptr.hbm [resolvable:$true] %s159
      %162 = dma.vmem_to_hbm [thread:$0]  %s158, 128, %s160, [#allocation3]
    $region33: #{residual_mlp.1} parent=1 // pred_fallthru
      _
    // Predicated region
    $region34: #{residual_mlp.1} parent=1 // pred_check
      _
    $region35: #{residual_mlp.1} parent=1 // pred_check_branch
      %164 = sbr.rel (0) target = $region37
    $region36: #{residual_mlp.1} parent=1 // pred_region
      %166 = dma.done [#allocation3], 128
    $region37: #{residual_mlp.1} parent=1 // pred_fallthru
      _
    %167 = vsyncpa [#allocation3], 1

</llo_original>
